<compile_context>
chip_gen: v7x
topology: tpu7x:2x2x1
jax: 0.10.0
libtpu: 0.0.40
codegen_flags: <defaults>
</compile_context>

<pallas_src>
import jax
import jax.numpy as jnp
from jax.experimental import pallas as pl
from jax.experimental.pallas import tpu as pltpu


def _loc_emb_kernel(idx_ref, wtab_ref, out_ref):
    # idx_ref:  (TR, G)     int32; pre-offset: idx[r, k] = flat_index + k*L
    # wtab_ref: (G*L, G*E)  float32 block-diagonal replicated embedding table
    # out_ref:  (TR, G*E)   float32 (lane-dense: G*E >= 128 when E < 128)
    tr, g = idx_ref.shape
    gl = wtab_ref.shape[0]

    iota = jax.lax.broadcasted_iota(jnp.int32, (tr, gl), 1)        # (TR, G*L)
    multihot = jnp.zeros((tr, gl), jnp.float32)
    for k in range(g):                                             # static unroll (G <= 16)
        idx_k = idx_ref[:, k:k + 1]                                # (TR, 1)
        multihot = multihot + (iota == idx_k).astype(jnp.float32)

    # Single MXU matmul: rows of the block-diagonal table land in disjoint
    # lane segments [k*E:(k+1)*E] of the 128(+)-lane output row.
    out_ref[...] = jnp.dot(
        multihot, wtab_ref[...], preferred_element_type=jnp.float32
    )


def loc_emb_forward(x, table, *, max_tile_rows=512):
    """Embedding lookup: returns table[x]; table row 0 is the zero (padding) row.

    x:     int array of any shape (e.g. (B, S))
    table: (L, E) float32 embedding table
    """
    orig_shape = x.shape
    L, E = table.shape
    flat = x.reshape(-1).astype(jnp.int32)
    n = flat.shape[0]

    # Grouping factor for lane-dense stores.
    if E < 128 and 128 % E == 0:
        G = 128 // E
    else:
        G = 1
    # Keep the replicated table comfortably resident in VMEM (v7x: 64 MiB/TC).
    if G > 1 and (G * L) * (G * E) * 4 > (8 << 20):
        G = 1

    groups = -(-n // G)
    tr = min(max_tile_rows, ((groups + 7) // 8) * 8)               # rows per tile, mult of 8
    groups_pad = -(-groups // tr) * tr
    n_pad = groups_pad * G

    flat = jnp.pad(flat, (0, n_pad - n))                           # pad with index 0
    idx = flat.reshape(groups_pad, G) + jnp.arange(G, dtype=jnp.int32)[None, :] * L

    if G > 1:
        wide = jnp.zeros((G * L, G * E), jnp.float32)
        for k in range(G):
            wide = wide.at[k * L:(k + 1) * L, k * E:(k + 1) * E].set(
                table.astype(jnp.float32))
    else:
        wide = table.astype(jnp.float32)

    grid = (groups_pad // tr,)
    out = pl.pallas_call(
        _loc_emb_kernel,
        out_shape=jax.ShapeDtypeStruct((groups_pad, G * E), jnp.float32),
        grid_spec=pltpu.PrefetchScalarGridSpec(
            num_scalar_prefetch=0,
            grid=grid,
            in_specs=[
                pl.BlockSpec((tr, G), lambda i: (i, 0)),           # index tile
                pl.BlockSpec((G * L, G * E), lambda i: (0, 0)),    # resident table
            ],
            out_specs=pl.BlockSpec((tr, G * E), lambda i: (i, 0)),
        ),
        compiler_params=pltpu.CompilerParams(
            dimension_semantics=("parallel",)
        ),
    )(idx, wide)

    # (groups_pad, G*E) row-major == (n_pad, E) row-major.
    return out.reshape(n_pad, E)[:n].reshape(*orig_shape, E)


def init_loc_emb_params(key, loc_size, loc_emb_size):
    """Mirror LOC_EMB.__init__: Embedding(loc_size + 1, loc_emb_size, padding_idx=0)."""
    L = loc_size + 1
    table = jax.random.normal(key, (L, loc_emb_size), dtype=jnp.float32)
    table = table.at[0].set(0.0)  # padding_idx=0 -> zero row
    return table


if __name__ == "__main__":
    key = jax.random.PRNGKey(0)
    k_tab, k_idx = jax.random.split(key)

    # Small, module-consistent shapes: param.loc_size=16, param.loc_emb_size=32
    loc_size = 16
    loc_emb_size = 32
    batch, seq = 2, 8

    table = init_loc_emb_params(k_tab, loc_size, loc_emb_size)     # (17, 32)
    x = jax.random.randint(k_idx, (batch, seq), 0, loc_size + 1, dtype=jnp.int32)

    out = loc_emb_forward(x, table)                                # (2, 8, 32)
    out = jax.block_until_ready(out)

    # Correctness vs plain-JAX reference gather.
    ref = jnp.take(table, x, axis=0)
    assert out.shape == (batch, seq, loc_emb_size)
    assert jnp.allclose(out, ref, atol=1e-6), "mismatch vs reference gather"
    # padding_idx=0 semantics: index 0 maps to the all-zeros embedding.
    assert jnp.allclose(loc_emb_forward(jnp.zeros((1, 1), jnp.int32), table), 0.0)

    print("KERNEL_OK")
</pallas_src>

<mosaic_0001>
module attributes {stable_mosaic.version = 11 : i64} {
  func.func @_loc_emb_kernel(%arg0: i32, %arg1: memref<8x4xi32, #tpu.memory_space<vmem>>, %arg2: memref<68x128xf32, #tpu.memory_space<vmem>>, %arg3: memref<8x128xf32, #tpu.memory_space<vmem>>) attributes {dimension_semantics = [#tpu.dimension_semantics<parallel>], iteration_bounds = array<i64: 1>, scalar_prefetch = 0 : i64, scratch_operands = 0 : i64, tpu.core_type = #tpu.core_type<tc>, window_params = [{transform_indices = @transform_0, window_bounds = array<i64: 8, 4>}, {pipeline_mode = #tpu.pipeline_mode<synchronous>, transform_indices = @transform_1, window_bounds = array<i64: 68, 128>}, {transform_indices = @transform_2, window_bounds = array<i64: 8, 128>}]} {
    %0 = tpu.iota {dimensions = array<i32: 1>} : vector<8x68xi32>
    %cst = arith.constant 0.000000e+00 : f32
    %1 = vector.broadcast %cst : f32 to vector<8x68xf32>
    %c0 = arith.constant 0 : index
    %c0_0 = arith.constant 0 : index
    %2 = vector.load %arg1[%c0, %c0_0] : memref<8x4xi32, #tpu.memory_space<vmem>>, vector<8x1xi32>
    %3 = vector.broadcast %2 : vector<8x1xi32> to vector<8x68xi32>
    %4 = arith.cmpi eq, %0, %3 : vector<8x68xi32>
    %5 = arith.extui %4 : vector<8x68xi1> to vector<8x68xi32>
    %6 = arith.sitofp %5 : vector<8x68xi32> to vector<8x68xf32>
    %7 = arith.addf %1, %6 : vector<8x68xf32>
    %c0_1 = arith.constant 0 : index
    %c1 = arith.constant 1 : index
    %8 = vector.load %arg1[%c0_1, %c1] : memref<8x4xi32, #tpu.memory_space<vmem>>, vector<8x1xi32>
    %9 = vector.broadcast %8 : vector<8x1xi32> to vector<8x68xi32>
    %10 = arith.cmpi eq, %0, %9 : vector<8x68xi32>
    %11 = arith.extui %10 : vector<8x68xi1> to vector<8x68xi32>
    %12 = arith.sitofp %11 : vector<8x68xi32> to vector<8x68xf32>
    %13 = arith.addf %7, %12 : vector<8x68xf32>
    %c0_2 = arith.constant 0 : index
    %c2 = arith.constant 2 : index
    %14 = vector.load %arg1[%c0_2, %c2] : memref<8x4xi32, #tpu.memory_space<vmem>>, vector<8x1xi32>
    %15 = vector.broadcast %14 : vector<8x1xi32> to vector<8x68xi32>
    %16 = arith.cmpi eq, %0, %15 : vector<8x68xi32>
    %17 = arith.extui %16 : vector<8x68xi1> to vector<8x68xi32>
    %18 = arith.sitofp %17 : vector<8x68xi32> to vector<8x68xf32>
    %19 = arith.addf %13, %18 : vector<8x68xf32>
    %c0_3 = arith.constant 0 : index
    %c3 = arith.constant 3 : index
    %20 = vector.load %arg1[%c0_3, %c3] : memref<8x4xi32, #tpu.memory_space<vmem>>, vector<8x1xi32>
    %21 = vector.broadcast %20 : vector<8x1xi32> to vector<8x68xi32>
    %22 = arith.cmpi eq, %0, %21 : vector<8x68xi32>
    %23 = arith.extui %22 : vector<8x68xi1> to vector<8x68xi32>
    %24 = arith.sitofp %23 : vector<8x68xi32> to vector<8x68xf32>
    %25 = arith.addf %19, %24 : vector<8x68xf32>
    %c0_4 = arith.constant 0 : index
    %c0_5 = arith.constant 0 : index
    %26 = vector.load %arg2[%c0_4, %c0_5] : memref<68x128xf32, #tpu.memory_space<vmem>>, vector<68x128xf32>
    %cst_6 = arith.constant dense<0.000000e+00> : vector<8x128xf32>
    %27 = tpu.matmul %25, %26, %cst_6 {dimension_numbers = #tpu.dot_dimension_numbers<[1], [0], [0], [1], [0, 0, 1, 1], [], []>} : vector<8x68xf32>, vector<68x128xf32>, vector<8x128xf32> -> vector<8x128xf32>
    %c0_7 = arith.constant 0 : index
    %c0_8 = arith.constant 0 : index
    %28 = vector.load %arg3[%c0_7, %c0_8] : memref<8x128xf32, #tpu.memory_space<vmem>>, vector<8x128xf32>
    tpu.vector_store %arg3[%c0_7, %c0_8], %27 {strides = array<i32>} : memref<8x128xf32, #tpu.memory_space<vmem>>, vector<8x128xf32>,
    return
  }
  func.func @transform_0(%arg0: i32) -> (i32, i32) {
    %c0_i32 = arith.constant 0 : i32
    %c0_i32_0 = arith.constant 0 : i32
    return %arg0, %c0_i32 : i32, i32
  }
  func.func @transform_1(%arg0: i32) -> (i32, i32) {
    %c0_i32 = arith.constant 0 : i32
    %c0_i32_0 = arith.constant 0 : i32
    %c0_i32_1 = arith.constant 0 : i32
    return %c0_i32, %c0_i32_0 : i32, i32
  }
  func.func @transform_2(%arg0: i32) -> (i32, i32) {
    %c0_i32 = arith.constant 0 : i32
    %c0_i32_0 = arith.constant 0 : i32
    return %arg0, %c0_i32 : i32, i32
  }
}

</mosaic_0001>

<llo_original>
// kernel: tpu_custom_call.1
$region0: #{tpu_custom_call.1}
  #allocation0 [shape = 'u32[]', space=smem, size = 0x4, offset = 0x4, fixed_abs, tag = 'smem constant byte address 0x4 - core index']
  #allocation1 [shape = 'u32[144,128]{1,0:T(1,128)}', space=vmem, size = 0x12000, scoped, tag = 'internal scratch']
  %s0 = inlined_call_operand.vmem [shape: s32[8,4], index: 0, kind: input, shape index: {}]
  %s1 = inlined_call_operand.hbm [shape: f32[68,128], index: 1, kind: input, shape index: {}]
  %s2 = inlined_call_operand.hbm [shape: f32[8,128], index: 2, kind: output, shape index: {}]
  %s3 = sld [smem:[#allocation0]]
  $region22: #{tpu_custom_call.1} parent=0
    _
  %s5 = ssub.s32 1, %s3
  %s6 = scalar_select 0, %s5, %s3
  $region1: #{tpu_custom_call.1} parent=0
    #allocation2 [shape = 'u8[36864]{0}', space=vmem, size = 0x9000, scoped, tag = 'input window, operand 1, single buffered']
    #allocation3 [shape = 's32[1]{0}', space=sflag, size = 0x4, scoped, tag = 'scoped memory for tpu_custom_call.1']
    #allocation4 [shape = 's32[1]{0}', space=sflag, size = 0x4, scoped, tag = 'scoped memory for tpu_custom_call.1']
    #allocation5 [shape = 'u8[4096]{0}', space=vmem, size = 0x1000, scoped, tag = 'output window, operand 0, single buffered']
    %7 = vsyncpa [#allocation3], 0
    %8 = vsyncpa [#allocation4], 0
    // Predicated region
    $region2: #{tpu_custom_call.1} parent=1 // pred_check
      _
    $region3: #{tpu_custom_call.1} parent=1 // pred_check_branch
      %10 = sbr.rel (0) target = $region5
    $region4: #{tpu_custom_call.1} parent=1 // pred_region
      _
    $region5: #{tpu_custom_call.1} parent=1 // pred_fallthru
      _
    // Predicated region
    $region6: #{tpu_custom_call.1} parent=1 // pred_check
      _
    $region7: #{tpu_custom_call.1} parent=1 // pred_check_branch
      %12 = sbr.rel (0) target = $region9
    $region8: #{tpu_custom_call.1} parent=1 // pred_region
      %s14 = ssub.s32 1152, 1152
      %15 = vsyncadd [#allocation3], %s14
      %s16 = sshll.u32 [#allocation2], 4
      %s17 = int_to_ptr.vmem [resolvable:$true] %s16
      %22 = dma.hbm_to_vmem [thread:$0]  %s1, 1152, %s17, [#allocation3], 128, 128, 8
    $region9: #{tpu_custom_call.1} parent=1 // pred_fallthru
      _
    // Predicated region
    $region10: #{tpu_custom_call.1} parent=1 // pred_check
      _
    $region11: #{tpu_custom_call.1} parent=1 // pred_check_branch
      %24 = sbr.rel (0) target = $region13
    $region12: #{tpu_custom_call.1} parent=1 // pred_region
      %25 = dma.done [#allocation3], 1152
    $region13: #{tpu_custom_call.1} parent=1 // pred_fallthru
      _
    %v26 = vlaneseq
    %v27 = vand.u32 %v26, 127
    %v28 = vld [vmem:[%s0] sm:$0xff]
    %29 = vset.pattern.permute.xlu0 0
    %30 = vperm.xlu0 %29, %v28
    %v31 = vpop.permute.xlu0 %30
    %vm32 = vcmp.eq.s32.totalorder %v27, %v31
    %v33 = vsel %vm32, 1, 0
    %v34 = vcvt.s32.f32 %v33
    %v35 = vadd.f32 %v34, 0.0
    %36 = vset.pattern.permute.xlu0 1
    %37 = vperm.xlu0 %36, %v28
    %v38 = vpop.permute.xlu0 %37
    %vm39 = vcmp.eq.s32.totalorder %v27, %v38
    %v40 = vsel %vm39, 1, 0
    %v41 = vcvt.s32.f32 %v40
    %v42 = vadd.f32 %v35, %v41
    %43 = vset.pattern.permute.xlu0 2
    %44 = vperm.xlu0 %43, %v28
    %v45 = vpop.permute.xlu0 %44
    %vm46 = vcmp.eq.s32.totalorder %v27, %v45
    %v47 = vsel %vm46, 1, 0
    %v48 = vcvt.s32.f32 %v47
    %v49 = vadd.f32 %v42, %v48
    %50 = vset.pattern.permute.xlu0 3
    %51 = vperm.xlu0 %50, %v28
    %v52 = vpop.permute.xlu0 %51
    %vm53 = vcmp.eq.s32.totalorder %v27, %v52
    %v54 = vsel %vm53, 1, 0
    %v55 = vcvt.s32.f32 %v54
    %v56 = vadd.f32 %v49, %v55
    %v57 = vld [vmem:[#allocation2] sm:$0xff]
    %v58 = vld [vmem:[#allocation2 + $0x8] sm:$0xff]
    %v59 = vld [vmem:[#allocation2 + $0x10] sm:$0xff]
    %v60 = vld [vmem:[#allocation2 + $0x18] sm:$0xff]
    %v61 = vld [vmem:[#allocation2 + $0x20] sm:$0xff]
    %v62 = vld [vmem:[#allocation2 + $0x28] sm:$0xff]
    %v63 = vld [vmem:[#allocation2 + $0x30] sm:$0xff]
    %v64 = vld [vmem:[#allocation2 + $0x38] sm:$0xff]
    %v65 = vld [vmem:[#allocation2 + $0x40] sm:$0xf]
    %vm66 = vcmask 556032
    %v68 = vsel %vm66, %v56, 0
    %vm70 = vcmask 1043456
    %v72 = vsel %vm70, %v65, 0
    %74 = vmatprep.subr.mxu0 0.0
    %75 = vmatpush1.msra.mxu0 %v57
    %76 = vmatprep.subr.mxu0 0.0
    %77 = vmatpush1.msra.mxu0 %v58
    %78 = vmatprep.subr.mxu0 0.0
    %79 = vmatpush1.msra.mxu0 %v59
    %80 = vmatprep.subr.mxu0 0.0
    %81 = vmatpush1.msra.mxu0 %v60
    %82 = vmatprep.subr.mxu0 0.0
    %83 = vmatpush1.msra.mxu0 %v61
    %84 = vmatprep.subr.mxu0 0.0
    %85 = vmatpush1.msra.mxu0 %v62
    %86 = vmatprep.subr.mxu0 0.0
    %87 = vmatpush1.msra.mxu0 %v63
    %88 = vmatprep.subr.mxu0 0.0
    %89 = vmatpush1.msra.mxu0 %v64
    %90 = vmatprep.subr.mxu0 0.0
    %91 = vmatpush1.msra.mxu0 %v72
    %92 = vmatprep.subr.mxu0 0.0
    %93 = vmatpush1.msra.mxu0 0.0
    %94 = vmatprep.subr.mxu0 0.0
    %95 = vmatpush1.msra.mxu0 0.0
    %96 = vmatprep.subr.mxu0 0.0
    %97 = vmatpush1.msra.mxu0 0.0
    %98 = vmatprep.subr.mxu0 0.0
    %99 = vmatpush1.msra.mxu0 0.0
    %100 = vmatprep.subr.mxu0 0.0
    %101 = vmatpush1.msra.mxu0 0.0
    %102 = vmatprep.subr.mxu0 0.0
    %103 = vmatpush1.msra.mxu0 0.0
    %104 = vmatprep.subr.mxu0 0.0
    %105 = vmatpush1.msra.mxu0 0.0
    %106 = vmatprep.subr.mxu0 0.0
    %107 = vmatpush1.msra.mxu0 0.0
    %108 = vmatprep.subr.mxu0 0.0
    %109 = vmatpush1.msra.mxu0 0.0
    %110 = vmatprep.subr.mxu0 0.0
    %111 = vmatpush1.msra.mxu0 0.0
    %112 = vmatprep.subr.mxu0 0.0
    %113 = vmatpush1.msra.mxu0 0.0
    %114 = vmatprep.subr.mxu0 0.0
    %115 = vmatpush1.msra.mxu0 0.0
    %116 = vmatprep.subr.mxu0 0.0
    %117 = vmatpush1.msra.mxu0 0.0
    %118 = vmatprep.subr.mxu0 0.0
    %119 = vmatpush1.msra.mxu0 0.0
    %120 = vmatprep.subr.mxu0 0.0
    %121 = vmatpush1.msra.mxu0 0.0
    %122 = vmatprep.subr.mxu0 0.0
    %123 = vmatpush1.msra.mxu0 0.0
    %124 = vmatprep.subr.mxu0 0.0
    %125 = vmatpush1.msra.mxu0 0.0
    %126 = vmatprep.subr.mxu0 0.0
    %127 = vmatpush1.msra.mxu0 0.0
    %128 = vmatprep.subr.mxu0 0.0
    %129 = vmatpush1.msra.mxu0 0.0
    %130 = vmatprep.subr.mxu0 0.0
    %131 = vmatpush1.msra.mxu0 0.0
    %132 = vmatprep.subr.mxu0 0.0
    %133 = vmatpush1.msra.mxu0 0.0
    %134 = vmatprep.subr.mxu0 0.0
    %135 = vmatpush1.msra.mxu0 0.0
    %136 = vmatprep.subr.mxu0 0.0
    %137 = vmatpush1.msra.mxu0 0.0
    %138 = vmatprep.mubr.f32.mxu0 0.0
    %139 = vmatmul.mubr.f32.gmra.mrb[0].mxu0 %v68
    %v140 = vpop.f32.mrb[0].mxu0
    %v141 = vadd.f32 0.0, %v140
    %v142 = vpop.f32.mrb[0].mxu0
    %143 = vdwg.mxu0
    %144 = vst [vmem:[#allocation5] sm:$0xff] %v141
    // Predicated region
    $region14: #{tpu_custom_call.1} parent=1 // pred_check
      _
    $region15: #{tpu_custom_call.1} parent=1 // pred_check_branch
      %146 = sbr.rel (0) target = $region17
    $region16: #{tpu_custom_call.1} parent=1 // pred_region
      %s148 = ssub.s32 128, 128
      %149 = vsyncadd [#allocation4], %s148
      %s151 = sshll.u32 [#allocation5], 4
      %s152 = int_to_ptr.vmem [resolvable:$true] %s151
      %154 = dma.vmem_to_hbm [thread:$0]  %s152, 128, %s2, [#allocation4]
    $region17: #{tpu_custom_call.1} parent=1 // pred_fallthru
      _
    // Predicated region
    $region18: #{tpu_custom_call.1} parent=1 // pred_check
      _
    $region19: #{tpu_custom_call.1} parent=1 // pred_check_branch
      %156 = sbr.rel (0) target = $region21
    $region20: #{tpu_custom_call.1} parent=1 // pred_region
      %157 = dma.done [#allocation4], 128
    $region21: #{tpu_custom_call.1} parent=1 // pred_fallthru
      _
    %158 = vsyncpa [#allocation3], 1
    %159 = vsyncpa [#allocation4], 1

</llo_original>
